<compile_context>
chip_gen: v7x
topology: tpu7x:2x2x1
jax: 0.10.0
libtpu: 0.0.40
codegen_flags: <defaults>
</compile_context>

<pallas_src>
import numpy as np
import jax
import jax.numpy as jnp
from jax.experimental import pallas as pl
from jax.experimental.pallas import tpu as pltpu

LEVELS = 3
_INV_SQRT2 = 1.0 / np.sqrt(2.0)


def _haar_pair(n: int):
    """(n//2, n) lowpass / highpass Haar analysis operators (stride 2, even n)."""
    assert n % 2 == 0
    lo = np.zeros((n // 2, n), np.float32)
    hi = np.zeros((n // 2, n), np.float32)
    for i in range(n // 2):
        lo[i, 2 * i] = _INV_SQRT2
        lo[i, 2 * i + 1] = _INV_SQRT2
        hi[i, 2 * i] = _INV_SQRT2
        hi[i, 2 * i + 1] = -_INV_SQRT2
    return lo, hi


def _kron_analysis_T(h: int, w: int) -> np.ndarray:
    """(h*w, h*w) matrix KT such that, for x_flat row-major over (h, w):
         out = x_flat @ KT
       has columns ordered [LL | LH | HL | HH], with LL itself row-major over
       (h//2, w//2) -- i.e. directly usable as the next level's flat input."""
    lh, gh = _haar_pair(h)
    lw, gw = _haar_pair(w)
    bands = [np.kron(lh, lw), np.kron(lh, gw), np.kron(gh, lw), np.kron(gh, gw)]
    k = np.concatenate(bands, axis=0)          # (h*w, h*w): rows = output coeffs
    return np.ascontiguousarray(k.T)           # transpose once on host


def _pick_bb(B, C, H, W, elem_bytes=4, vmem_budget_bytes=16 << 20):
    """Batch elements per grid step: largest divisor of B whose double-buffered
    input blocks fit a conservative VMEM budget (safe for v7x's 64 MiB VMEM) and
    which keeps the (bb*C, H*W) input block sublane-aligned."""
    candidates = [bb for bb in range(1, B + 1)
                  if B % bb == 0 and (bb == B or (bb * C) % 8 == 0)]
    per_bb = 2 * 2 * C * H * W * elem_bytes    # 2 inputs x 2 pipeline buffers
    for bb in sorted(candidates, reverse=True):
        if bb * per_bb <= vmem_budget_bytes:
            return bb
    return min(candidates)


def _make_kernel(bb: int, C: int, hw_sizes, weights):
    n_sizes = [h * w for h, w in hw_sizes]     # flat input size per level

    def kernel(pred_ref, targ_ref, k0_ref, k1_ref, k2_ref, out_ref):
        k_refs = (k0_ref, k1_ref, k2_ref)
        # Linearity: single DWT chain on the difference.
        d = pred_ref[...].astype(jnp.float32) - targ_ref[...].astype(jnp.float32)
        z = d                                                  # (bb*C, H*W)
        acc = jnp.zeros((bb * C, 1), jnp.float32)              # weighted per-(b,c) sums
        a_ll = None
        for j in range(LEVELS):
            n = n_sizes[j]
            out = jnp.dot(z, k_refs[j][...],
                          preferred_element_type=jnp.float32)  # (bb*C, n)
            a_all = jnp.sum(jnp.abs(out), axis=1, keepdims=True)
            ll = out[:, : n // 4]                              # next level's input
            a_ll = jnp.sum(jnp.abs(ll), axis=1, keepdims=True)
            # high-band L1 mean over (C, 3 bands, h/2, w/2); high sum = total - LL
            acc = acc + jnp.float32(weights[j] / (3.0 * C * (n // 4))) * (a_all - a_ll)
            z = ll
        # lowpass (final LL) term, weight 0.5; mean over (C, h_J, w_J)
        acc = acc + jnp.float32(0.5 / (C * (n_sizes[-1] // 4))) * a_ll
        # per-batch scalar reduction -> SMEM output
        for b in range(bb):
            out_ref[b, 0] = jnp.sum(acc[b * C:(b + 1) * C, :])

    return kernel


def wavelet_loss(pred, target):
    """Pallas equivalent of WaveletLoss(nn.L1Loss(reduction='none'), 'haar', 'zero', 3)."""
    if pred.ndim != 4:
        pred = pred[:, None]
    if target.ndim != 4:
        target = target[:, None]
    assert pred.shape == target.shape
    B, C, H, W = pred.shape

    hw_sizes = []
    h, w = H, W
    for _ in range(LEVELS):
        assert h % 2 == 0 and w % 2 == 0, \
            "Haar / mode='zero' kernel requires even spatial sizes at every level"
        hw_sizes.append((h, w))
        h, w = h // 2, w // 2

    kts = [jnp.asarray(_kron_analysis_T(hh, ww)) for hh, ww in hw_sizes]
    weights = np.linspace(1.0 / LEVELS, 1.0, LEVELS)           # [1/3, 2/3, 1]
    bb = _pick_bb(B, C, H, W)

    # Free relabel in HBM: lane-dense (B*C, H*W) layout, row-major over (H, W).
    p2 = pred.reshape(B * C, H * W)
    t2 = target.reshape(B * C, H * W)

    img_spec = pl.BlockSpec((bb * C, H * W), lambda i: (i, 0))
    mat_specs = [pl.BlockSpec(m.shape, lambda i: (0, 0)) for m in kts]

    out = pl.pallas_call(
        _make_kernel(bb, C, hw_sizes, weights),
        out_shape=jax.ShapeDtypeStruct((B, 1), jnp.float32),
        grid_spec=pltpu.PrefetchScalarGridSpec(
            num_scalar_prefetch=0,
            grid=(B // bb,),
            in_specs=[img_spec, img_spec] + mat_specs,
            out_specs=pl.BlockSpec((bb, 1), lambda i: (i, 0),
                                   memory_space=pltpu.MemorySpace.SMEM),
        ),
        compiler_params=pltpu.CompilerParams(
            dimension_semantics=("parallel",)),
    )(p2, t2, *kts)
    return out[:, 0]


def wavelet_loss_ref(pred, target):
    """Pure-JAX reference (strided-slice Haar), mirrors the PyTorch forward."""
    def dwt(x):
        yl = x
        yh = []
        for _ in range(LEVELS):
            a = yl[:, :, 0::2, 0::2]
            b = yl[:, :, 0::2, 1::2]
            c = yl[:, :, 1::2, 0::2]
            d = yl[:, :, 1::2, 1::2]
            ll = (a + b + c + d) * 0.5
            lh = (a + b - c - d) * 0.5
            hl = (a - b + c - d) * 0.5
            hh = (a - b - c + d) * 0.5
            yh.append(jnp.stack([lh, hl, hh], axis=2))
            yl = ll
        return yl, yh

    ylp, yhp = dwt(pred)
    ylt, yht = dwt(target)
    loss = jnp.mean(jnp.abs(ylp - ylt), axis=(1, 2, 3)) * 0.5
    for hp, ht, w in zip(yhp, yht, np.linspace(1.0 / LEVELS, 1.0, LEVELS)):
        loss = loss + jnp.float32(w) * jnp.mean(jnp.abs(hp - ht), axis=(1, 2, 3, 4))
    return loss


if __name__ == "__main__":
    key = jax.random.PRNGKey(0)
    k1, k2 = jax.random.split(key)
    B, C, H, W = 2, 4, 16, 16
    pred = jax.random.normal(k1, (B, C, H, W), dtype=jnp.float32)
    target = jax.random.normal(k2, (B, C, H, W), dtype=jnp.float32)

    out = wavelet_loss(pred, target)
    out = jax.block_until_ready(out)

    ref = wavelet_loss_ref(pred, target)
    assert out.shape == (B,)
    np.testing.assert_allclose(np.asarray(out), np.asarray(ref), rtol=1e-3, atol=1e-3)
    print("KERNEL_OK")
</pallas_src>

<mosaic_0001>
module attributes {stable_mosaic.version = 11 : i64} {
  func.func @kernel(%arg0: i32, %arg1: memref<8x256xf32, #tpu.memory_space<vmem>>, %arg2: memref<8x256xf32, #tpu.memory_space<vmem>>, %arg3: memref<256x256xf32, #tpu.memory_space<vmem>>, %arg4: memref<64x64xf32, #tpu.memory_space<vmem>>, %arg5: memref<16x16xf32, #tpu.memory_space<vmem>>, %arg6: memref<2x1xf32, #tpu.memory_space<smem>>) attributes {dimension_semantics = [#tpu.dimension_semantics<parallel>], iteration_bounds = array<i64: 1>, scalar_prefetch = 0 : i64, scratch_operands = 0 : i64, tpu.core_type = #tpu.core_type<tc>, window_params = [{transform_indices = @transform_0, window_bounds = array<i64: 8, 256>}, {transform_indices = @transform_1, window_bounds = array<i64: 8, 256>}, {pipeline_mode = #tpu.pipeline_mode<synchronous>, transform_indices = @transform_2, window_bounds = array<i64: 256, 256>}, {pipeline_mode = #tpu.pipeline_mode<synchronous>, transform_indices = @transform_3, window_bounds = array<i64: 64, 64>}, {pipeline_mode = #tpu.pipeline_mode<synchronous>, transform_indices = @transform_4, window_bounds = array<i64: 16, 16>}, {transform_indices = @transform_5, window_bounds = array<i64: 2, 1>}]} {
    %c0 = arith.constant 0 : index
    %c0_0 = arith.constant 0 : index
    %0 = vector.load %arg1[%c0, %c0_0] : memref<8x256xf32, #tpu.memory_space<vmem>>, vector<8x256xf32>
    %c0_1 = arith.constant 0 : index
    %c0_2 = arith.constant 0 : index
    %1 = vector.load %arg2[%c0_1, %c0_2] : memref<8x256xf32, #tpu.memory_space<vmem>>, vector<8x256xf32>
    %2 = arith.subf %0, %1 : vector<8x256xf32>
    %cst = arith.constant 0.000000e+00 : f32
    %3 = vector.broadcast %cst : f32 to vector<8x1xf32>
    %c0_3 = arith.constant 0 : index
    %c0_4 = arith.constant 0 : index
    %4 = vector.load %arg3[%c0_3, %c0_4] : memref<256x256xf32, #tpu.memory_space<vmem>>, vector<256x256xf32>
    %cst_5 = arith.constant dense<0.000000e+00> : vector<8x256xf32>
    %5 = tpu.matmul %2, %4, %cst_5 {dimension_numbers = #tpu.dot_dimension_numbers<[1], [0], [0], [1], [0, 0, 1, 1], [], []>} : vector<8x256xf32>, vector<256x256xf32>, vector<8x256xf32> -> vector<8x256xf32>
    %6 = math.absf %5 : vector<8x256xf32>
    %cst_6 = arith.constant dense<0.000000e+00> : vector<8xf32>
    %7 = vector.multi_reduction <add>, %6, %cst_6 [1] : vector<8x256xf32> to vector<8xf32>
    %8 = vector.shape_cast %7 : vector<8xf32> to vector<8x1xf32>
    %9 = vector.extract_strided_slice %5 {offsets = [0, 0], sizes = [8, 64], strides = [1, 1]} : vector<8x256xf32> to vector<8x64xf32>
    %10 = math.absf %9 : vector<8x64xf32>
    %cst_7 = arith.constant dense<0.000000e+00> : vector<8xf32>
    %11 = vector.multi_reduction <add>, %10, %cst_7 [1] : vector<8x64xf32> to vector<8xf32>
    %12 = vector.shape_cast %11 : vector<8xf32> to vector<8x1xf32>
    %13 = arith.subf %8, %12 : vector<8x1xf32>
    %cst_8 = arith.constant 4.34027781E-4 : f32
    %14 = vector.broadcast %cst_8 : f32 to vector<8x1xf32>
    %15 = arith.mulf %14, %13 : vector<8x1xf32>
    %16 = arith.addf %3, %15 : vector<8x1xf32>
    %c0_9 = arith.constant 0 : index
    %c0_10 = arith.constant 0 : index
    %17 = vector.load %arg4[%c0_9, %c0_10] : memref<64x64xf32, #tpu.memory_space<vmem>>, vector<64x64xf32>
    %cst_11 = arith.constant dense<0.000000e+00> : vector<8x64xf32>
    %18 = tpu.matmul %9, %17, %cst_11 {dimension_numbers = #tpu.dot_dimension_numbers<[1], [0], [0], [1], [0, 0, 1, 1], [], []>} : vector<8x64xf32>, vector<64x64xf32>, vector<8x64xf32> -> vector<8x64xf32>
    %19 = math.absf %18 : vector<8x64xf32>
    %cst_12 = arith.constant dense<0.000000e+00> : vector<8xf32>
    %20 = vector.multi_reduction <add>, %19, %cst_12 [1] : vector<8x64xf32> to vector<8xf32>
    %21 = vector.shape_cast %20 : vector<8xf32> to vector<8x1xf32>
    %22 = vector.extract_strided_slice %18 {offsets = [0, 0], sizes = [8, 16], strides = [1, 1]} : vector<8x64xf32> to vector<8x16xf32>
    %23 = math.absf %22 : vector<8x16xf32>
    %cst_13 = arith.constant dense<0.000000e+00> : vector<8xf32>
    %24 = vector.multi_reduction <add>, %23, %cst_13 [1] : vector<8x16xf32> to vector<8xf32>
    %25 = vector.shape_cast %24 : vector<8xf32> to vector<8x1xf32>
    %26 = arith.subf %21, %25 : vector<8x1xf32>
    %cst_14 = arith.constant 0.00347222225 : f32
    %27 = vector.broadcast %cst_14 : f32 to vector<8x1xf32>
    %28 = arith.mulf %27, %26 : vector<8x1xf32>
    %29 = arith.addf %16, %28 : vector<8x1xf32>
    %c0_15 = arith.constant 0 : index
    %c0_16 = arith.constant 0 : index
    %30 = vector.load %arg5[%c0_15, %c0_16] : memref<16x16xf32, #tpu.memory_space<vmem>>, vector<16x16xf32>
    %cst_17 = arith.constant dense<0.000000e+00> : vector<8x16xf32>
    %31 = tpu.matmul %22, %30, %cst_17 {dimension_numbers = #tpu.dot_dimension_numbers<[1], [0], [0], [1], [0, 0, 1, 1], [], []>} : vector<8x16xf32>, vector<16x16xf32>, vector<8x16xf32> -> vector<8x16xf32>
    %32 = math.absf %31 : vector<8x16xf32>
    %cst_18 = arith.constant dense<0.000000e+00> : vector<8xf32>
    %33 = vector.multi_reduction <add>, %32, %cst_18 [1] : vector<8x16xf32> to vector<8xf32>
    %34 = vector.shape_cast %33 : vector<8xf32> to vector<8x1xf32>
    %35 = vector.extract_strided_slice %31 {offsets = [0, 0], sizes = [8, 4], strides = [1, 1]} : vector<8x16xf32> to vector<8x4xf32>
    %36 = math.absf %35 : vector<8x4xf32>
    %cst_19 = arith.constant dense<0.000000e+00> : vector<8xf32>
    %37 = vector.multi_reduction <add>, %36, %cst_19 [1] : vector<8x4xf32> to vector<8xf32>
    %38 = vector.shape_cast %37 : vector<8xf32> to vector<8x1xf32>
    %39 = arith.subf %34, %38 : vector<8x1xf32>
    %cst_20 = arith.constant 0.020833334 : f32
    %40 = vector.broadcast %cst_20 : f32 to vector<8x1xf32>
    %41 = arith.mulf %40, %39 : vector<8x1xf32>
    %42 = arith.addf %29, %41 : vector<8x1xf32>
    %cst_21 = arith.constant 3.125000e-02 : f32
    %43 = vector.broadcast %cst_21 : f32 to vector<8x1xf32>
    %44 = arith.mulf %43, %38 : vector<8x1xf32>
    %45 = arith.addf %42, %44 : vector<8x1xf32>
    %46 = vector.extract_strided_slice %45 {offsets = [0, 0], sizes = [4, 1], strides = [1, 1]} : vector<8x1xf32> to vector<4x1xf32>
    %47 = vector.shape_cast %46 : vector<4x1xf32> to vector<1x4x1xf32>
    %cst_22 = arith.constant dense<0.000000e+00> : vector<1xf32>
    %48 = vector.multi_reduction <add>, %47, %cst_22 [1, 2] : vector<1x4x1xf32> to vector<1xf32>
    %49 = vector.shape_cast %48 : vector<1xf32> to vector<1x1x1xf32>
    %50 = vector.extract %49[0, 0, 0] : f32 from vector<1x1x1xf32>
    %c0_23 = arith.constant 0 : index
    %c0_24 = arith.constant 0 : index
    %51 = memref.load %arg6[%c0_23, %c0_24] : memref<2x1xf32, #tpu.memory_space<smem>>
    memref.store %50, %arg6[%c0_23, %c0_24] : memref<2x1xf32, #tpu.memory_space<smem>>
    %52 = vector.extract_strided_slice %45 {offsets = [4, 0], sizes = [4, 1], strides = [1, 1]} : vector<8x1xf32> to vector<4x1xf32>
    %53 = vector.shape_cast %52 : vector<4x1xf32> to vector<1x4x1xf32>
    %cst_25 = arith.constant dense<0.000000e+00> : vector<1xf32>
    %54 = vector.multi_reduction <add>, %53, %cst_25 [1, 2] : vector<1x4x1xf32> to vector<1xf32>
    %55 = vector.shape_cast %54 : vector<1xf32> to vector<1x1x1xf32>
    %56 = vector.extract %55[0, 0, 0] : f32 from vector<1x1x1xf32>
    %c1 = arith.constant 1 : index
    %c0_26 = arith.constant 0 : index
    %57 = memref.load %arg6[%c1, %c0_26] : memref<2x1xf32, #tpu.memory_space<smem>>
    memref.store %56, %arg6[%c1, %c0_26] : memref<2x1xf32, #tpu.memory_space<smem>>
    return
  }
  func.func @transform_0(%arg0: i32) -> (i32, i32) {
    %c0_i32 = arith.constant 0 : i32
    %c0_i32_0 = arith.constant 0 : i32
    return %arg0, %c0_i32 : i32, i32
  }
  func.func @transform_1(%arg0: i32) -> (i32, i32) {
    %c0_i32 = arith.constant 0 : i32
    %c0_i32_0 = arith.constant 0 : i32
    return %arg0, %c0_i32 : i32, i32
  }
  func.func @transform_2(%arg0: i32) -> (i32, i32) {
    %c0_i32 = arith.constant 0 : i32
    %c0_i32_0 = arith.constant 0 : i32
    %c0_i32_1 = arith.constant 0 : i32
    return %c0_i32, %c0_i32_0 : i32, i32
  }
  func.func @transform_3(%arg0: i32) -> (i32, i32) {
    %c0_i32 = arith.constant 0 : i32
    %c0_i32_0 = arith.constant 0 : i32
    %c0_i32_1 = arith.constant 0 : i32
    return %c0_i32, %c0_i32_0 : i32, i32
  }
  func.func @transform_4(%arg0: i32) -> (i32, i32) {
    %c0_i32 = arith.constant 0 : i32
    %c0_i32_0 = arith.constant 0 : i32
    %c0_i32_1 = arith.constant 0 : i32
    return %c0_i32, %c0_i32_0 : i32, i32
  }
  func.func @transform_5(%arg0: i32) -> (i32, i32) {
    %c0_i32 = arith.constant 0 : i32
    %c0_i32_0 = arith.constant 0 : i32
    return %arg0, %c0_i32 : i32, i32
  }
}

</mosaic_0001>

<llo_original>
// kernel: tpu_custom_call.1
$region0: #{tpu_custom_call.1}
  #allocation0 [shape = 'u32[]', space=smem, size = 0x4, offset = 0x4, fixed_abs, tag = 'smem constant byte address 0x4 - core index']
  #allocation1 [shape = 'u32[144,128]{1,0:T(1,128)}', space=vmem, size = 0x12000, scoped, tag = 'internal scratch']
  %s0 = inlined_call_operand.hbm [shape: f32[8,256], index: 0, kind: input, shape index: {}]
  %s1 = inlined_call_operand.hbm [shape: f32[8,256], index: 1, kind: input, shape index: {}]
  %s2 = inlined_call_operand.hbm [shape: f32[256,256], index: 2, kind: input, shape index: {}]
  %s3 = inlined_call_operand.hbm [shape: f32[64,64], index: 3, kind: input, shape index: {}]
  %s4 = inlined_call_operand.hbm [shape: f32[16,16], index: 4, kind: input, shape index: {}]
  %s5 = inlined_call_operand.vmem [shape: f32[2,1], index: 5, kind: output, shape index: {}]
  %s6 = sld [smem:[#allocation0]]
  $region50: #{tpu_custom_call.1} parent=0
    _
  %s8 = ssub.s32 1, %s6
  %s9 = scalar_select 0, %s8, %s6
  $region1: #{tpu_custom_call.1} parent=0
    #allocation2 [shape = 'u8[8192]{0}', space=vmem, size = 0x2000, scoped, tag = 'input window, operand 0, single buffered']
    #allocation3 [shape = 's32[1]{0}', space=sflag, size = 0x4, scoped, tag = 'scoped memory for tpu_custom_call.1']
    #allocation4 [shape = 's32[1]{0}', space=sflag, size = 0x4, scoped, tag = 'scoped memory for tpu_custom_call.1']
    #allocation5 [shape = 'u8[8192]{0}', space=vmem, size = 0x2000, scoped, tag = 'input window, operand 1, single buffered']
    #allocation6 [shape = 's32[1]{0}', space=sflag, size = 0x4, scoped, tag = 'scoped memory for tpu_custom_call.1']
    #allocation7 [shape = 'u8[262144]{0}', space=vmem, size = 0x40000, scoped, tag = 'input window, operand 2, single buffered']
    #allocation8 [shape = 'u8[32768]{0}', space=vmem, size = 0x8000, scoped, tag = 'input window, operand 3, single buffered']
    #allocation9 [shape = 's32[1]{0}', space=sflag, size = 0x4, scoped, tag = 'scoped memory for tpu_custom_call.1']
    #allocation10 [shape = 'u8[8192]{0}', space=vmem, size = 0x2000, scoped, tag = 'input window, operand 4, single buffered']
    #allocation11 [shape = 'u8[1024]{0}', space=smem, size = 0x400, scoped, tag = 'output window, operand 0, single buffered']
    %10 = vsyncpa [#allocation3], 0
    %11 = vsyncpa [#allocation6], 0
    %12 = vsyncpa [#allocation9], 0
    %13 = vsyncpa [#allocation4], 0
    // Predicated region
    $region2: #{tpu_custom_call.1} parent=1 // pred_check
      _
    $region3: #{tpu_custom_call.1} parent=1 // pred_check_branch
      %15 = sbr.rel (0) target = $region5
    $region4: #{tpu_custom_call.1} parent=1 // pred_region
      %s17 = ssub.s32 256, 256
      %18 = vsyncadd [#allocation3], %s17
      %s20 = sshll.u32 [#allocation2], 4
      %s21 = int_to_ptr.vmem [resolvable:$true] %s20
      %23 = dma.hbm_to_vmem [thread:$0]  %s0, 256, %s21, [#allocation3]
    $region5: #{tpu_custom_call.1} parent=1 // pred_fallthru
      _
    // Predicated region
    $region6: #{tpu_custom_call.1} parent=1 // pred_check
      _
    $region7: #{tpu_custom_call.1} parent=1 // pred_check_branch
      %25 = sbr.rel (0) target = $region9
    $region8: #{tpu_custom_call.1} parent=1 // pred_region
      %s27 = ssub.s32 256, 256
      %28 = vsyncadd [#allocation6], %s27
      %s30 = sshll.u32 [#allocation5], 4
      %s31 = int_to_ptr.vmem [resolvable:$true] %s30
      %33 = dma.hbm_to_vmem [thread:$0]  %s1, 256, %s31, [#allocation6]
    $region9: #{tpu_custom_call.1} parent=1 // pred_fallthru
      _
    // Predicated region
    $region10: #{tpu_custom_call.1} parent=1 // pred_check
      _
    $region11: #{tpu_custom_call.1} parent=1 // pred_check_branch
      %35 = sbr.rel (0) target = $region13
    $region12: #{tpu_custom_call.1} parent=1 // pred_region
      %s37 = ssub.s32 8192, 8192
      %38 = vsyncadd [#allocation6], %s37
      %s39 = sshll.u32 [#allocation7], 4
      %s40 = int_to_ptr.vmem [resolvable:$true] %s39
      %45 = dma.hbm_to_vmem [thread:$0]  %s2, 8192, %s40, [#allocation6], 256, 256, 16
    $region13: #{tpu_custom_call.1} parent=1 // pred_fallthru
      _
    // Predicated region
    $region14: #{tpu_custom_call.1} parent=1 // pred_check
      _
    $region15: #{tpu_custom_call.1} parent=1 // pred_check_branch
      %47 = sbr.rel (0) target = $region17
    $region16: #{tpu_custom_call.1} parent=1 // pred_region
      %s49 = ssub.s32 1024, 1024
      %50 = vsyncadd [#allocation9], %s49
      %s51 = sshll.u32 [#allocation8], 4
      %s52 = int_to_ptr.vmem [resolvable:$true] %s51
      %57 = dma.hbm_to_vmem [thread:$0]  %s3, 1024, %s52, [#allocation9], 128, 128, 8
    $region17: #{tpu_custom_call.1} parent=1 // pred_fallthru
      _
    // Predicated region
    $region18: #{tpu_custom_call.1} parent=1 // pred_check
      _
    $region19: #{tpu_custom_call.1} parent=1 // pred_check_branch
      %59 = sbr.rel (0) target = $region21
    $region20: #{tpu_custom_call.1} parent=1 // pred_region
      %s61 = ssub.s32 256, 256
      %62 = vsyncadd [#allocation9], %s61
      %s63 = sshll.u32 [#allocation10], 4
      %s64 = int_to_ptr.vmem [resolvable:$true] %s63
      %69 = dma.hbm_to_vmem [thread:$0]  %s4, 256, %s64, [#allocation9], 128, 128, 8
    $region21: #{tpu_custom_call.1} parent=1 // pred_fallthru
      _
    // Predicated region
    $region22: #{tpu_custom_call.1} parent=1 // pred_check
      _
    $region23: #{tpu_custom_call.1} parent=1 // pred_check_branch
      %71 = sbr.rel (0) target = $region25
    $region24: #{tpu_custom_call.1} parent=1 // pred_region
      %72 = dma.done [#allocation3], 256
    $region25: #{tpu_custom_call.1} parent=1 // pred_fallthru
      _
    // Predicated region
    $region26: #{tpu_custom_call.1} parent=1 // pred_check
      _
    $region27: #{tpu_custom_call.1} parent=1 // pred_check_branch
      %74 = sbr.rel (0) target = $region29
    $region28: #{tpu_custom_call.1} parent=1 // pred_region
      %75 = dma.done [#allocation6], 256
    $region29: #{tpu_custom_call.1} parent=1 // pred_fallthru
      _
    // Predicated region
    $region30: #{tpu_custom_call.1} parent=1 // pred_check
      _
    $region31: #{tpu_custom_call.1} parent=1 // pred_check_branch
      %77 = sbr.rel (0) target = $region33
    $region32: #{tpu_custom_call.1} parent=1 // pred_region
      %78 = dma.done [#allocation6], 8192
    $region33: #{tpu_custom_call.1} parent=1 // pred_fallthru
      _
    // Predicated region
    $region34: #{tpu_custom_call.1} parent=1 // pred_check
      _
    $region35: #{tpu_custom_call.1} parent=1 // pred_check_branch
      %80 = sbr.rel (0) target = $region37
    $region36: #{tpu_custom_call.1} parent=1 // pred_region
      %81 = dma.done [#allocation9], 1024
    $region37: #{tpu_custom_call.1} parent=1 // pred_fallthru
      _
    // Predicated region
    $region38: #{tpu_custom_call.1} parent=1 // pred_check
      _
    $region39: #{tpu_custom_call.1} parent=1 // pred_check_branch
      %83 = sbr.rel (0) target = $region41
    $region40: #{tpu_custom_call.1} parent=1 // pred_region
      %84 = dma.done [#allocation9], 256
    $region41: #{tpu_custom_call.1} parent=1 // pred_fallthru
      _
    %v85 = vld [vmem:[#allocation2] sm:$0xff]
    %v86 = vld [vmem:[#allocation2 + $0x8] sm:$0xff]
    %v87 = vld [vmem:[#allocation5] sm:$0xff]
    %v88 = vld [vmem:[#allocation5 + $0x8] sm:$0xff]
    %v89 = vsub.f32 %v85, %v87
    %v90 = vsub.f32 %v86, %v88
    %v91 = vld [vmem:[#allocation7] sm:$0xff]
    %v92 = vld [vmem:[#allocation7 + $0x8] sm:$0xff]
    %v93 = vld [vmem:[#allocation7 + $0x10] sm:$0xff]
    %v94 = vld [vmem:[#allocation7 + $0x18] sm:$0xff]
    %v95 = vld [vmem:[#allocation7 + $0x20] sm:$0xff]
    %v96 = vld [vmem:[#allocation7 + $0x28] sm:$0xff]
    %v97 = vld [vmem:[#allocation7 + $0x30] sm:$0xff]
    %v98 = vld [vmem:[#allocation7 + $0x38] sm:$0xff]
    %v99 = vld [vmem:[#allocation7 + $0x40] sm:$0xff]
    %v100 = vld [vmem:[#allocation7 + $0x48] sm:$0xff]
    %v101 = vld [vmem:[#allocation7 + $0x50] sm:$0xff]
    %v102 = vld [vmem:[#allocation7 + $0x58] sm:$0xff]
    %v103 = vld [vmem:[#allocation7 + $0x60] sm:$0xff]
    %v104 = vld [vmem:[#allocation7 + $0x68] sm:$0xff]
    %v105 = vld [vmem:[#allocation7 + $0x70] sm:$0xff]
    %v106 = vld [vmem:[#allocation7 + $0x78] sm:$0xff]
    %v107 = vld [vmem:[#allocation7 + $0x80] sm:$0xff]
    %v108 = vld [vmem:[#allocation7 + $0x88] sm:$0xff]
    %v109 = vld [vmem:[#allocation7 + $0x90] sm:$0xff]
    %v110 = vld [vmem:[#allocation7 + $0x98] sm:$0xff]
    %v111 = vld [vmem:[#allocation7 + $0xa0] sm:$0xff]
    %v112 = vld [vmem:[#allocation7 + $0xa8] sm:$0xff]
    %v113 = vld [vmem:[#allocation7 + $0xb0] sm:$0xff]
    %v114 = vld [vmem:[#allocation7 + $0xb8] sm:$0xff]
    %v115 = vld [vmem:[#allocation7 + $0xc0] sm:$0xff]
    %v116 = vld [vmem:[#allocation7 + $0xc8] sm:$0xff]
    %v117 = vld [vmem:[#allocation7 + $0xd0] sm:$0xff]
    %v118 = vld [vmem:[#allocation7 + $0xd8] sm:$0xff]
    %v119 = vld [vmem:[#allocation7 + $0xe0] sm:$0xff]
    %v120 = vld [vmem:[#allocation7 + $0xe8] sm:$0xff]
    %v121 = vld [vmem:[#allocation7 + $0xf0] sm:$0xff]
    %v122 = vld [vmem:[#allocation7 + $0xf8] sm:$0xff]
    %v123 = vld [vmem:[#allocation7 + $0x100] sm:$0xff]
    %v124 = vld [vmem:[#allocation7 + $0x108] sm:$0xff]
    %v125 = vld [vmem:[#allocation7 + $0x110] sm:$0xff]
    %v126 = vld [vmem:[#allocation7 + $0x118] sm:$0xff]
    %v127 = vld [vmem:[#allocation7 + $0x120] sm:$0xff]
    %v128 = vld [vmem:[#allocation7 + $0x128] sm:$0xff]
    %v129 = vld [vmem:[#allocation7 + $0x130] sm:$0xff]
    %v130 = vld [vmem:[#allocation7 + $0x138] sm:$0xff]
    %v131 = vld [vmem:[#allocation7 + $0x140] sm:$0xff]
    %v132 = vld [vmem:[#allocation7 + $0x148] sm:$0xff]
    %v133 = vld [vmem:[#allocation7 + $0x150] sm:$0xff]
    %v134 = vld [vmem:[#allocation7 + $0x158] sm:$0xff]
    %v135 = vld [vmem:[#allocation7 + $0x160] sm:$0xff]
    %v136 = vld [vmem:[#allocation7 + $0x168] sm:$0xff]
    %v137 = vld [vmem:[#allocation7 + $0x170] sm:$0xff]
    %v138 = vld [vmem:[#allocation7 + $0x178] sm:$0xff]
    %v139 = vld [vmem:[#allocation7 + $0x180] sm:$0xff]
    %v140 = vld [vmem:[#allocation7 + $0x188] sm:$0xff]
    %v141 = vld [vmem:[#allocation7 + $0x190] sm:$0xff]
    %v142 = vld [vmem:[#allocation7 + $0x198] sm:$0xff]
    %v143 = vld [vmem:[#allocation7 + $0x1a0] sm:$0xff]
    %v144 = vld [vmem:[#allocation7 + $0x1a8] sm:$0xff]
    %v145 = vld [vmem:[#allocation7 + $0x1b0] sm:$0xff]
    %v146 = vld [vmem:[#allocation7 + $0x1b8] sm:$0xff]
    %v147 = vld [vmem:[#allocation7 + $0x1c0] sm:$0xff]
    %v148 = vld [vmem:[#allocation7 + $0x1c8] sm:$0xff]
    %v149 = vld [vmem:[#allocation7 + $0x1d0] sm:$0xff]
    %v150 = vld [vmem:[#allocation7 + $0x1d8] sm:$0xff]
    %v151 = vld [vmem:[#allocation7 + $0x1e0] sm:$0xff]
    %v152 = vld [vmem:[#allocation7 + $0x1e8] sm:$0xff]
    %v153 = vld [vmem:[#allocation7 + $0x1f0] sm:$0xff]
    %v154 = vld [vmem:[#allocation7 + $0x1f8] sm:$0xff]
    %155 = vmatprep.subr.mxu0 %v92
    %156 = vmatpush1.msra.mxu0 %v91
    %157 = vmatprep.subr.mxu0 %v94
    %158 = vmatpush1.msra.mxu0 %v93
    %159 = vmatprep.subr.mxu0 %v96
    %160 = vmatpush1.msra.mxu0 %v95
    %161 = vmatprep.subr.mxu0 %v98
    %162 = vmatpush1.msra.mxu0 %v97
    %163 = vmatprep.subr.mxu0 %v100
    %164 = vmatpush1.msra.mxu0 %v99
    %165 = vmatprep.subr.mxu0 %v102
    %166 = vmatpush1.msra.mxu0 %v101
    %167 = vmatprep.subr.mxu0 %v104
    %168 = vmatpush1.msra.mxu0 %v103
    %169 = vmatprep.subr.mxu0 %v106
    %170 = vmatpush1.msra.mxu0 %v105
    %171 = vmatprep.subr.mxu0 %v108
    %172 = vmatpush1.msra.mxu0 %v107
    %173 = vmatprep.subr.mxu0 %v110
    %174 = vmatpush1.msra.mxu0 %v109
    %175 = vmatprep.subr.mxu0 %v112
    %176 = vmatpush1.msra.mxu0 %v111
    %177 = vmatprep.subr.mxu0 %v114
    %178 = vmatpush1.msra.mxu0 %v113
    %179 = vmatprep.subr.mxu0 %v116
    %180 = vmatpush1.msra.mxu0 %v115
    %181 = vmatprep.subr.mxu0 %v118
    %182 = vmatpush1.msra.mxu0 %v117
    %183 = vmatprep.subr.mxu0 %v120
    %184 = vmatpush1.msra.mxu0 %v119
    %185 = vmatprep.subr.mxu0 %v122
    %186 = vmatpush1.msra.mxu0 %v121
    %187 = vmatprep.subr.mxu0 %v124
    %188 = vmatpush1.msra.mxu0 %v123
    %189 = vmatprep.subr.mxu0 %v126
    %190 = vmatpush1.msra.mxu0 %v125
    %191 = vmatprep.subr.mxu0 %v128
    %192 = vmatpush1.msra.mxu0 %v127
    %193 = vmatprep.subr.mxu0 %v130
    %194 = vmatpush1.msra.mxu0 %v129
    %195 = vmatprep.subr.mxu0 %v132
    %196 = vmatpush1.msra.mxu0 %v131
    %197 = vmatprep.subr.mxu0 %v134
    %198 = vmatpush1.msra.mxu0 %v133
    %199 = vmatprep.subr.mxu0 %v136
    %200 = vmatpush1.msra.mxu0 %v135
    %201 = vmatprep.subr.mxu0 %v138
    %202 = vmatpush1.msra.mxu0 %v137
    %203 = vmatprep.subr.mxu0 %v140
    %204 = vmatpush1.msra.mxu0 %v139
    %205 = vmatprep.subr.mxu0 %v142
    %206 = vmatpush1.msra.mxu0 %v141
    %207 = vmatprep.subr.mxu0 %v144
    %208 = vmatpush1.msra.mxu0 %v143
    %209 = vmatprep.subr.mxu0 %v146
    %210 = vmatpush1.msra.mxu0 %v145
    %211 = vmatprep.subr.mxu0 %v148
    %212 = vmatpush1.msra.mxu0 %v147
    %213 = vmatprep.subr.mxu0 %v150
    %214 = vmatpush1.msra.mxu0 %v149
    %215 = vmatprep.subr.mxu0 %v152
    %216 = vmatpush1.msra.mxu0 %v151
    %217 = vmatprep.subr.mxu0 %v154
    %218 = vmatpush1.msra.mxu0 %v153
    %219 = vmatprep.mubr.f32.mxu0 %v90
    %220 = vmatmul.mubr.f32.gmra.mrb[0].mxu0 %v89
    %v221 = vpop.f32.mrb[0].mxu0
    %v222 = vadd.f32 0.0, %v221
    %v223 = vpop.f32.mrb[0].mxu0
    %v224 = vadd.f32 0.0, %v223
    %225 = vdwg.mxu0
    %v226 = vand.u32 2147483647, %v222
    %v227 = vand.u32 2147483647, %v224
    %v228 = vadd.f32 %v226, %v227
    %229 = vadd.xlane.f32.xlu0 %v228
    %v230 = vpop.xlane.xlu0 %229
    %vm231 = vcmask 523264
    %v232 = vsel %vm231, %v226, 0.0
    %233 = vadd.xlane.f32.xlu0 %v232
    %v234 = vpop.xlane.xlu0 %233
    %v235 = vsub.f32 %v230, %v234
    %v236 = vmul.f32 %v235, 0.00043402778
    %v237 = vadd.f32 %v236, 0.0
    %v238 = vld [vmem:[#allocation8] sm:$0xff]
    %v239 = vld [vmem:[#allocation8 + $0x8] sm:$0xff]
    %v240 = vld [vmem:[#allocation8 + $0x10] sm:$0xff]
    %v241 = vld [vmem:[#allocation8 + $0x18] sm:$0xff]
    %v242 = vld [vmem:[#allocation8 + $0x20] sm:$0xff]
    %v243 = vld [vmem:[#allocation8 + $0x28] sm:$0xff]
    %v244 = vld [vmem:[#allocation8 + $0x30] sm:$0xff]
    %v245 = vld [vmem:[#allocation8 + $0x38] sm:$0xff]
    %v247 = vsel %vm231, %v222, 0
    %249 = vmatprep.subr.mxu0 0.0
    %250 = vmatpush1.msra.mxu0 %v238
    %251 = vmatprep.subr.mxu0 0.0
    %252 = vmatpush1.msra.mxu0 %v239
    %253 = vmatprep.subr.mxu0 0.0
    %254 = vmatpush1.msra.mxu0 %v240
    %255 = vmatprep.subr.mxu0 0.0
    %256 = vmatpush1.msra.mxu0 %v241
    %257 = vmatprep.subr.mxu0 0.0
    %258 = vmatpush1.msra.mxu0 %v242
    %259 = vmatprep.subr.mxu0 0.0
    %260 = vmatpush1.msra.mxu0 %v243
    %261 = vmatprep.subr.mxu0 0.0
    %262 = vmatpush1.msra.mxu0 %v244
    %263 = vmatprep.subr.mxu0 0.0
    %264 = vmatpush1.msra.mxu0 %v245
    %265 = vmatprep.subr.mxu0 0.0
    %266 = vmatpush1.msra.mxu0 0.0
    %267 = vmatprep.subr.mxu0 0.0
    %268 = vmatpush1.msra.mxu0 0.0
    %269 = vmatprep.subr.mxu0 0.0
    %270 = vmatpush1.msra.mxu0 0.0
    %271 = vmatprep.subr.mxu0 0.0
    %272 = vmatpush1.msra.mxu0 0.0
    %273 = vmatprep.subr.mxu0 0.0
    %274 = vmatpush1.msra.mxu0 0.0
    %275 = vmatprep.subr.mxu0 0.0
    %276 = vmatpush1.msra.mxu0 0.0
    %277 = vmatprep.subr.mxu0 0.0
    %278 = vmatpush1.msra.mxu0 0.0
    %279 = vmatprep.subr.mxu0 0.0
    %280 = vmatpush1.msra.mxu0 0.0
    %281 = vmatprep.subr.mxu0 0.0
    %282 = vmatpush1.msra.mxu0 0.0
    %283 = vmatprep.subr.mxu0 0.0
    %284 = vmatpush1.msra.mxu0 0.0
    %285 = vmatprep.subr.mxu0 0.0
    %286 = vmatpush1.msra.mxu0 0.0
    %287 = vmatprep.subr.mxu0 0.0
    %288 = vmatpush1.msra.mxu0 0.0
    %289 = vmatprep.subr.mxu0 0.0
    %290 = vmatpush1.msra.mxu0 0.0
    %291 = vmatprep.subr.mxu0 0.0
    %292 = vmatpush1.msra.mxu0 0.0
    %293 = vmatprep.subr.mxu0 0.0
    %294 = vmatpush1.msra.mxu0 0.0
    %295 = vmatprep.subr.mxu0 0.0
    %296 = vmatpush1.msra.mxu0 0.0
    %297 = vmatprep.subr.mxu0 0.0
    %298 = vmatpush1.msra.mxu0 0.0
    %299 = vmatprep.subr.mxu0 0.0
    %300 = vmatpush1.msra.mxu0 0.0
    %301 = vmatprep.subr.mxu0 0.0
    %302 = vmatpush1.msra.mxu0 0.0
    %303 = vmatprep.subr.mxu0 0.0
    %304 = vmatpush1.msra.mxu0 0.0
    %305 = vmatprep.subr.mxu0 0.0
    %306 = vmatpush1.msra.mxu0 0.0
    %307 = vmatprep.subr.mxu0 0.0
    %308 = vmatpush1.msra.mxu0 0.0
    %309 = vmatprep.subr.mxu0 0.0
    %310 = vmatpush1.msra.mxu0 0.0
    %311 = vmatprep.subr.mxu0 0.0
    %312 = vmatpush1.msra.mxu0 0.0
    %313 = vmatprep.mubr.f32.mxu0 0.0
    %314 = vmatmul.mubr.f32.gmra.mrb[0].mxu0 %v247
    %v315 = vpop.f32.mrb[0].mxu0
    %v316 = vadd.f32 0.0, %v315
    %v317 = vpop.f32.mrb[0].mxu0
    %318 = vdwg.mxu0
    %v319 = vand.u32 2147483647, %v316
    %v320 = vsel %vm231, %v319, 0.0
    %321 = vadd.xlane.f32.xlu0 %v320
    %v322 = vpop.xlane.xlu0 %321
    %vm323 = vcmask 130048
    %v324 = vsel %vm323, %v319, 0.0
    %325 = vadd.xlane.f32.xlu0 %v324
    %v326 = vpop.xlane.xlu0 %325
    %v327 = vsub.f32 %v322, %v326
    %v328 = vmul.f32 %v327, 0.0034722222
    %v329 = vadd.f32 %v237, %v328
    %v330 = vld [vmem:[#allocation10] sm:$0xff]
    %v331 = vld [vmem:[#allocation10 + $0x8] sm:$0xff]
    %v333 = vsel %vm323, %v316, 0
    %335 = vmatprep.subr.mxu0 0.0
    %336 = vmatpush1.msra.mxu0 %v330
    %337 = vmatprep.subr.mxu0 0.0
    %338 = vmatpush1.msra.mxu0 %v331
    %339 = vmatprep.subr.mxu0 0.0
    %340 = vmatpush1.msra.mxu0 0.0
    %341 = vmatprep.subr.mxu0 0.0
    %342 = vmatpush1.msra.mxu0 0.0
    %343 = vmatprep.subr.mxu0 0.0
    %344 = vmatpush1.msra.mxu0 0.0
    %345 = vmatprep.subr.mxu0 0.0
    %346 = vmatpush1.msra.mxu0 0.0
    %347 = vmatprep.subr.mxu0 0.0
    %348 = vmatpush1.msra.mxu0 0.0
    %349 = vmatprep.subr.mxu0 0.0
    %350 = vmatpush1.msra.mxu0 0.0
    %351 = vmatprep.subr.mxu0 0.0
    %352 = vmatpush1.msra.mxu0 0.0
    %353 = vmatprep.subr.mxu0 0.0
    %354 = vmatpush1.msra.mxu0 0.0
    %355 = vmatprep.subr.mxu0 0.0
    %356 = vmatpush1.msra.mxu0 0.0
    %357 = vmatprep.subr.mxu0 0.0
    %358 = vmatpush1.msra.mxu0 0.0
    %359 = vmatprep.subr.mxu0 0.0
    %360 = vmatpush1.msra.mxu0 0.0
    %361 = vmatprep.subr.mxu0 0.0
    %362 = vmatpush1.msra.mxu0 0.0
    %363 = vmatprep.subr.mxu0 0.0
    %364 = vmatpush1.msra.mxu0 0.0
    %365 = vmatprep.subr.mxu0 0.0
    %366 = vmatpush1.msra.mxu0 0.0
    %367 = vmatprep.subr.mxu0 0.0
    %368 = vmatpush1.msra.mxu0 0.0
    %369 = vmatprep.subr.mxu0 0.0
    %370 = vmatpush1.msra.mxu0 0.0
    %371 = vmatprep.subr.mxu0 0.0
    %372 = vmatpush1.msra.mxu0 0.0
    %373 = vmatprep.subr.mxu0 0.0
    %374 = vmatpush1.msra.mxu0 0.0
    %375 = vmatprep.subr.mxu0 0.0
    %376 = vmatpush1.msra.mxu0 0.0
    %377 = vmatprep.subr.mxu0 0.0
    %378 = vmatpush1.msra.mxu0 0.0
    %379 = vmatprep.subr.mxu0 0.0
    %380 = vmatpush1.msra.mxu0 0.0
    %381 = vmatprep.subr.mxu0 0.0
    %382 = vmatpush1.msra.mxu0 0.0
    %383 = vmatprep.subr.mxu0 0.0
    %384 = vmatpush1.msra.mxu0 0.0
    %385 = vmatprep.subr.mxu0 0.0
    %386 = vmatpush1.msra.mxu0 0.0
    %387 = vmatprep.subr.mxu0 0.0
    %388 = vmatpush1.msra.mxu0 0.0
    %389 = vmatprep.subr.mxu0 0.0
    %390 = vmatpush1.msra.mxu0 0.0
    %391 = vmatprep.subr.mxu0 0.0
    %392 = vmatpush1.msra.mxu0 0.0
    %393 = vmatprep.subr.mxu0 0.0
    %394 = vmatpush1.msra.mxu0 0.0
    %395 = vmatprep.subr.mxu0 0.0
    %396 = vmatpush1.msra.mxu0 0.0
    %397 = vmatprep.subr.mxu0 0.0
    %398 = vmatpush1.msra.mxu0 0.0
    %399 = vmatprep.mubr.f32.mxu0 0.0
    %400 = vmatmul.mubr.f32.gmra.mrb[0].mxu0 %v333
    %v401 = vpop.f32.mrb[0].mxu0
    %v402 = vadd.f32 0.0, %v401
    %v403 = vpop.f32.mrb[0].mxu0
    %404 = vdwg.mxu0
    %v405 = vand.u32 2147483647, %v402
    %v406 = vsel %vm323, %v405, 0.0
    %407 = vadd.xlane.f32.xlu0 %v406
    %v408 = vpop.xlane.xlu0 %407
    %vm409 = vcmask 31744
    %v410 = vsel %vm409, %v405, 0.0
    %411 = vadd.xlane.f32.xlu0 %v410
    %v412 = vpop.xlane.xlu0 %411
    %v413 = vsub.f32 %v408, %v412
    %v414 = vmul.f32 %v413, 0.020833334
    %v415 = vadd.f32 %v329, %v414
    %v416 = vmul.f32 %v412, 0.03125
    %v417 = vadd.f32 %v415, %v416
    %vm418 = vcmask 3072
    %v419 = vsel %vm418, %v417, 0.0
    %420 = vadd.xlane.f32.xlu0 %v419
    %v421 = vpop.xlane.xlu0 %420
    %v422 = vrot.slane %v421, 4
    %v423 = vadd.f32 %v421, %v422
    %v424 = vrot.slane %v423, 2
    %v425 = vadd.f32 %v423, %v424
    %v426 = vrot.slane %v425, 1
    %v427 = vadd.f32 %v425, %v426
    %s428 = vtos %v427
    %s429 = scalar_lea.smem [#allocation11], 0
    %430 = sst [smem:[%s429]] %s428
    %v432 = vrot.slane %v417, 4
    %v434 = vsel %vm418, %v432, 0.0
    %435 = vadd.xlane.f32.xlu0 %v434
    %v436 = vpop.xlane.xlu0 %435
    %v437 = vrot.slane %v436, 4
    %v438 = vadd.f32 %v436, %v437
    %v439 = vrot.slane %v438, 2
    %v440 = vadd.f32 %v438, %v439
    %v441 = vrot.slane %v440, 1
    %v442 = vadd.f32 %v440, %v441
    %s443 = vtos %v442
    %s444 = scalar_lea.smem [#allocation11], 128
    %445 = sst [smem:[%s444]] %s443
    // Predicated region
    $region42: #{tpu_custom_call.1} parent=1 // pred_check
      _
    $region43: #{tpu_custom_call.1} parent=1 // pred_check_branch
      %447 = sbr.rel (0) target = $region45
    $region44: #{tpu_custom_call.1} parent=1 // pred_region
      %s449 = ssub.s32 32, 32
      %450 = vsyncadd [#allocation4], %s449
      %s452 = sshll.u32 %s5, 4
      %s453 = int_to_ptr.vmem [resolvable:$true] %s452
      %455 = dma.smem_to_vmem [#allocation11], 32, %s453, [#allocation4]
    $region45: #{tpu_custom_call.1} parent=1 // pred_fallthru
      _
    // Predicated region
    $region46: #{tpu_custom_call.1} parent=1 // pred_check
      _
    $region47: #{tpu_custom_call.1} parent=1 // pred_check_branch
      %457 = sbr.rel (0) target = $region49
    $region48: #{tpu_custom_call.1} parent=1 // pred_region
      %458 = dma.done [#allocation4], 32
    $region49: #{tpu_custom_call.1} parent=1 // pred_fallthru
      _
    %459 = sfence
    %460 = vsyncpa [#allocation3], 1
    %461 = vsyncpa [#allocation6], 1
    %462 = vsyncpa [#allocation9], 1
    %463 = vsyncpa [#allocation4], 1

</llo_original>
